<compile_context>
chip_gen: v6e
topology: v6e:2x2x1
jax: 0.10.0
libtpu: 0.0.40
codegen_flags: <defaults>
</compile_context>

<pallas_src>
import functools

import jax
import jax.numpy as jnp
from jax.experimental import pallas as pl
from jax.experimental.pallas import tpu as pltpu


def _pick_tile(total, align, max_tile):
    """Largest tile <= max_tile that divides `total` and is a multiple of `align`
    (falls back to the full dimension when nothing fits)."""
    if total <= max_tile:
        return total
    t = (max_tile // align) * align
    while t >= align:
        if total % t == 0:
            return t
        t -= align
    return total


# ----------------------------- cls pooling -----------------------------

def _cls_linear_kernel(cls_ref, w_ref, b_ref, emb_ref, out_ref):
    """cls_ref: [TB, D] (token 0 pre-selected), w: [D, C], b: [1, C]."""
    emb = cls_ref[...]                                            # native dtype
    emb_ref[...] = emb.astype(emb_ref.dtype)
    # C is tiny (often 1); the dot is cheap, the kernel is bandwidth-bound anyway.
    out = jnp.dot(emb.astype(jnp.float32), w_ref[...].astype(jnp.float32),
                  preferred_element_type=jnp.float32)             # [TB, C]
    out_ref[...] = (out + b_ref[...].astype(jnp.float32)).astype(out_ref.dtype)


def _cls_forward(last_hidden_state, weight, bias):
    B, S, D = last_hidden_state.shape
    C = weight.shape[1]
    # Only the first token is used: slice before the kernel so HBM->VMEM traffic is
    # B*D instead of B*S*D.
    cls_tokens = last_hidden_state[:, 0, :]                       # [B, D]
    tb = _pick_tile(B, 8, 128)
    return pl.pallas_call(
        _cls_linear_kernel,
        grid=(B // tb,),
        in_specs=[
            pl.BlockSpec((tb, D), lambda b: (b, 0)),
            pl.BlockSpec((D, C), lambda b: (0, 0)),               # resident
            pl.BlockSpec((1, C), lambda b: (0, 0)),               # resident
        ],
        out_specs=(
            pl.BlockSpec((tb, D), lambda b: (b, 0)),
            pl.BlockSpec((tb, C), lambda b: (b, 0)),
        ),
        out_shape=(
            jax.ShapeDtypeStruct((B, D), last_hidden_state.dtype),
            jax.ShapeDtypeStruct((B, C), last_hidden_state.dtype),
        ),
        compiler_params=pltpu.CompilerParams(
            dimension_semantics=("parallel",),                    # megacore on v7x
            vmem_limit_bytes=32 * 1024 * 1024,
        ),
    )(cls_tokens, weight, bias)


# ----------------------------- mean pooling -----------------------------

def _mean_linear_kernel(h_ref, w_ref, b_ref, emb_ref, out_ref, acc_ref, *, seq_len):
    """h: [TB, TS, D] tile; acc: [TB, D] f32 running sum over the sequence axis."""
    s = pl.program_id(1)

    @pl.when(s == 0)
    def _():
        acc_ref[...] = jnp.zeros_like(acc_ref)

    # Reduce the tile over the sequence axis, accumulating in f32 scratch
    # (no full-tile f32 materialization on the critical path).
    acc_ref[...] += jnp.sum(h_ref[...], axis=1, dtype=jnp.float32)

    @pl.when(s == pl.num_programs(1) - 1)
    def _():
        emb = acc_ref[...] * (1.0 / float(seq_len))               # [TB, D] f32 mean
        emb_ref[...] = emb.astype(emb_ref.dtype)
        out = jnp.dot(emb, w_ref[...].astype(jnp.float32),
                      preferred_element_type=jnp.float32)         # [TB, C]
        out_ref[...] = (out + b_ref[...].astype(jnp.float32)).astype(out_ref.dtype)


def _mean_forward(last_hidden_state, weight, bias):
    B, S, D = last_hidden_state.shape
    C = weight.shape[1]
    tb = _pick_tile(B, 8, 8)
    # Keep each hidden-state tile <= ~4 MiB so double-buffering plus the f32
    # accumulator fit scoped VMEM comfortably on v5e/v6e/v7x.
    itemsize = jnp.dtype(last_hidden_state.dtype).itemsize
    max_ts = max(8, ((4 * 1024 * 1024) // max(1, tb * D * itemsize)) // 8 * 8)
    ts = _pick_tile(S, 8, max_ts)
    kernel = functools.partial(_mean_linear_kernel, seq_len=S)
    return pl.pallas_call(
        kernel,
        grid=(B // tb, S // ts),
        in_specs=[
            pl.BlockSpec((tb, ts, D), lambda b, s: (b, s, 0)),
            pl.BlockSpec((D, C), lambda b, s: (0, 0)),            # resident
            pl.BlockSpec((1, C), lambda b, s: (0, 0)),            # resident
        ],
        out_specs=(
            pl.BlockSpec((tb, D), lambda b, s: (b, 0)),           # written once (last s)
            pl.BlockSpec((tb, C), lambda b, s: (b, 0)),           # written once (last s)
        ),
        out_shape=(
            jax.ShapeDtypeStruct((B, D), last_hidden_state.dtype),
            jax.ShapeDtypeStruct((B, C), last_hidden_state.dtype),
        ),
        scratch_shapes=[pltpu.VMEM((tb, D), jnp.float32)],
        compiler_params=pltpu.CompilerParams(
            dimension_semantics=("parallel", "arbitrary"),        # batch across TCs,
            vmem_limit_bytes=32 * 1024 * 1024,                    # seq is a reduction
        ),
    )(last_hidden_state, weight, bias)


def t5_predictor_forward(last_hidden_state, weight, bias, *, pooling='cls'):
    """Pallas implementation of T5Predictor.forward given the base model's output.

    last_hidden_state: [B, S, D]
    weight:            [D, n_classes]   (transposed nn.Linear weight)
    bias:              [1, n_classes]
    returns (input_embedding [B, D], outputs [B, n_classes]).
    nn.Dropout is identity in eval/inference mode.
    """
    if pooling == 'cls':
        return _cls_forward(last_hidden_state, weight, bias)
    elif pooling == 'mean':
        return _mean_forward(last_hidden_state, weight, bias)
    raise ValueError(f"unsupported pooling: {pooling}")


if __name__ == "__main__":
    # Small, deterministic synthetic setup consistent with the module:
    # batch=2, seq=8, base_model_output_size (hidden) = 32, n_classes = 1.
    B, S, D, C = 2, 8, 32, 1

    key = jax.random.PRNGKey(0)
    k_h, k_w, k_b = jax.random.split(key, 3)

    # TODO(synk): the T5 base model itself is an external HuggingFace module; we
    # synthesize its last_hidden_state output deterministically instead of running
    # a transformer.
    last_hidden_state = jax.random.normal(k_h, (B, S, D), dtype=jnp.float32)

    # Deterministic linear-layer params (stored as [D_in, n_classes]).
    weight = jax.random.normal(k_w, (D, C), dtype=jnp.float32) * 0.02
    bias = jax.random.normal(k_b, (1, C), dtype=jnp.float32) * 0.02

    # Run both pooling modes supported by the module.
    emb_cls, out_cls = t5_predictor_forward(last_hidden_state, weight, bias, pooling='cls')
    emb_mean, out_mean = t5_predictor_forward(last_hidden_state, weight, bias, pooling='mean')
    jax.block_until_ready((emb_cls, out_cls, emb_mean, out_mean))

    # Reference check in plain JAX (dropout is identity at inference).
    ref_emb_cls = last_hidden_state[:, 0, :]
    ref_out_cls = ref_emb_cls @ weight + bias
    ref_emb_mean = last_hidden_state.mean(axis=1)
    ref_out_mean = ref_emb_mean @ weight + bias

    assert jnp.allclose(emb_cls, ref_emb_cls, atol=1e-5)
    assert jnp.allclose(out_cls, ref_out_cls, atol=1e-5)
    assert jnp.allclose(emb_mean, ref_emb_mean, atol=1e-5)
    assert jnp.allclose(out_mean, ref_out_mean, atol=1e-5)

    print("KERNEL_OK")
</pallas_src>

<mosaic_0001>
module attributes {stable_mosaic.version = 11 : i64} {
  func.func @_cls_linear_kernel(%arg0: i32, %arg1: memref<2x32xf32, #tpu.memory_space<vmem>>, %arg2: memref<32x1xf32, #tpu.memory_space<vmem>>, %arg3: memref<1x1xf32, #tpu.memory_space<vmem>>, %arg4: memref<2x32xf32, #tpu.memory_space<vmem>>, %arg5: memref<2x1xf32, #tpu.memory_space<vmem>>) attributes {dimension_semantics = [#tpu.dimension_semantics<parallel>], iteration_bounds = array<i64: 1>, scalar_prefetch = 0 : i64, scratch_operands = 0 : i64, tpu.core_type = #tpu.core_type<tc>, window_params = [{transform_indices = @transform_0, window_bounds = array<i64: 2, 32>}, {pipeline_mode = #tpu.pipeline_mode<synchronous>, transform_indices = @transform_1, window_bounds = array<i64: 32, 1>}, {pipeline_mode = #tpu.pipeline_mode<synchronous>, transform_indices = @transform_2, window_bounds = array<i64: 1, 1>}, {transform_indices = @transform_3, window_bounds = array<i64: 2, 32>}, {transform_indices = @transform_4, window_bounds = array<i64: 2, 1>}]} {
    %c0 = arith.constant 0 : index
    %c0_0 = arith.constant 0 : index
    %0 = vector.load %arg1[%c0, %c0_0] : memref<2x32xf32, #tpu.memory_space<vmem>>, vector<2x32xf32>
    %c0_1 = arith.constant 0 : index
    %c0_2 = arith.constant 0 : index
    %1 = vector.load %arg4[%c0_1, %c0_2] : memref<2x32xf32, #tpu.memory_space<vmem>>, vector<2x32xf32>
    tpu.vector_store %arg4[%c0_1, %c0_2], %0 {strides = array<i32>} : memref<2x32xf32, #tpu.memory_space<vmem>>, vector<2x32xf32>,
    %c0_3 = arith.constant 0 : index
    %c0_4 = arith.constant 0 : index
    %2 = vector.load %arg2[%c0_3, %c0_4] : memref<32x1xf32, #tpu.memory_space<vmem>>, vector<32x1xf32>
    %cst = arith.constant dense<0.000000e+00> : vector<2x1xf32>
    %3 = tpu.matmul %0, %2, %cst {dimension_numbers = #tpu.dot_dimension_numbers<[1], [0], [0], [1], [0, 0, 1, 1], [], []>} : vector<2x32xf32>, vector<32x1xf32>, vector<2x1xf32> -> vector<2x1xf32>
    %c0_5 = arith.constant 0 : index
    %c0_6 = arith.constant 0 : index
    %4 = vector.load %arg3[%c0_5, %c0_6] : memref<1x1xf32, #tpu.memory_space<vmem>>, vector<1x1xf32>
    %5 = vector.broadcast %4 : vector<1x1xf32> to vector<2x1xf32>
    %6 = arith.addf %3, %5 : vector<2x1xf32>
    %c0_7 = arith.constant 0 : index
    %c0_8 = arith.constant 0 : index
    %7 = vector.load %arg5[%c0_7, %c0_8] : memref<2x1xf32, #tpu.memory_space<vmem>>, vector<2x1xf32>
    tpu.vector_store %arg5[%c0_7, %c0_8], %6 {strides = array<i32>} : memref<2x1xf32, #tpu.memory_space<vmem>>, vector<2x1xf32>,
    return
  }
  func.func @transform_0(%arg0: i32) -> (i32, i32) {
    %c0_i32 = arith.constant 0 : i32
    %c0_i32_0 = arith.constant 0 : i32
    return %arg0, %c0_i32 : i32, i32
  }
  func.func @transform_1(%arg0: i32) -> (i32, i32) {
    %c0_i32 = arith.constant 0 : i32
    %c0_i32_0 = arith.constant 0 : i32
    %c0_i32_1 = arith.constant 0 : i32
    return %c0_i32, %c0_i32_0 : i32, i32
  }
  func.func @transform_2(%arg0: i32) -> (i32, i32) {
    %c0_i32 = arith.constant 0 : i32
    %c0_i32_0 = arith.constant 0 : i32
    %c0_i32_1 = arith.constant 0 : i32
    return %c0_i32, %c0_i32_0 : i32, i32
  }
  func.func @transform_3(%arg0: i32) -> (i32, i32) {
    %c0_i32 = arith.constant 0 : i32
    %c0_i32_0 = arith.constant 0 : i32
    return %arg0, %c0_i32 : i32, i32
  }
  func.func @transform_4(%arg0: i32) -> (i32, i32) {
    %c0_i32 = arith.constant 0 : i32
    %c0_i32_0 = arith.constant 0 : i32
    return %arg0, %c0_i32 : i32, i32
  }
}

</mosaic_0001>

<llo_original>
// kernel: tpu_custom_call.1
$region0: #{tpu_custom_call.1}
  #allocation0 [shape = 'u32[]', space=smem, size = 0x4, offset = 0x4, fixed_abs, tag = 'smem constant byte address 0x4 - core index']
  #allocation1 [shape = 'u32[144,128]{1,0:T(1,128)}', space=vmem, size = 0x12000, scoped, tag = 'internal scratch']
  #allocation2 [shape = 'f32[1,1]{1,0:T(1,128)S(1)}', space=vmem, size = 0x200, scoped, tag = 'scoped memory for tpu_custom_call.1']
  %s0 = inlined_call_operand.vmem [shape: f32[2,32], index: 0, kind: input, shape index: {}]
  %s1 = inlined_call_operand.vmem [shape: f32[32,1], index: 1, kind: input, shape index: {}]
  %s2 = inlined_call_operand.<no memory space> [shape: f32[1,1], index: 2, kind: input, shape index: {}]
  %s3 = inlined_call_operand.hbm [shape: f32[2,32], index: 3, kind: output, shape index: {0}]
  %s4 = inlined_call_operand.vmem [shape: f32[2,1], index: 4, kind: output, shape index: {1}]
  %5 = xla_tuple %s3, %s4
  %s6 = sld [smem:[#allocation0]]
  $region30: #{tpu_custom_call.1} parent=0
    _
  %s8 = ssub.s32 1, %s6
  %s9 = scalar_select 0, %s8, %s6
  %v10 = vstv %s2
  %11 = vst [vmem:[#allocation2] sm:$0x1] %v10
  $region1: #{tpu_custom_call.1} parent=0
    #allocation3 [shape = 'u8[1024]{0}', space=vmem, size = 0x400, scoped, tag = 'output window, operand 0, single buffered']
    #allocation4 [shape = 's32[1]{0}', space=sflag, size = 0x4, scoped, tag = 'scoped memory for tpu_custom_call.1']
    %12 = vsyncpa [#allocation4], 0
    // Predicated region
    $region2: #{tpu_custom_call.1} parent=1 // pred_check
      _
    $region3: #{tpu_custom_call.1} parent=1 // pred_check_branch
      %14 = sbr.rel (0) target = $region5
    $region4: #{tpu_custom_call.1} parent=1 // pred_region
      _
    $region5: #{tpu_custom_call.1} parent=1 // pred_fallthru
      _
    // Predicated region
    $region6: #{tpu_custom_call.1} parent=1 // pred_check
      _
    $region7: #{tpu_custom_call.1} parent=1 // pred_check_branch
      %16 = sbr.rel (0) target = $region9
    $region8: #{tpu_custom_call.1} parent=1 // pred_region
      _
    $region9: #{tpu_custom_call.1} parent=1 // pred_fallthru
      _
    // Predicated region
    $region10: #{tpu_custom_call.1} parent=1 // pred_check
      _
    $region11: #{tpu_custom_call.1} parent=1 // pred_check_branch
      %18 = sbr.rel (0) target = $region13
    $region12: #{tpu_custom_call.1} parent=1 // pred_region
      _
    $region13: #{tpu_custom_call.1} parent=1 // pred_fallthru
      _
    %v19 = vld [vmem:[%s0] sm:$0x3]
    %vm20 = vcmask 254976
    %21 = vst.msk [vmem:[#allocation3] sm:$0x3] %vm20, %v19
    %v22 = vld [vmem:[%s1] sm:$0xff]
    %v23 = vld [vmem:[%s1 + $0x8] sm:$0xff]
    %v24 = vld [vmem:[%s1 + $0x10] sm:$0xff]
    %v25 = vld [vmem:[%s1 + $0x18] sm:$0xff]
    %v26 = vld [vmem:[#allocation2] sm:$0x1]
    %v28 = vlaneseq
    %v29 = vshrl.u32 %v28, 7
    %v30 = vsub.s32 0, %v29
    %v31 = vrot.slane %v26, %v30
    %vm33 = vcmask 261120
    %v35 = vsel %vm33, %v19, 0
    %37 = vmatprep.subr.mxu0 0.0
    %38 = vmatpush1.msra.mxu0 0.0
    %39 = vmatprep.subr.mxu0 0.0
    %40 = vmatpush1.msra.mxu0 0.0
    %41 = vmatprep.subr.mxu0 0.0
    %42 = vmatpush1.msra.mxu0 0.0
    %43 = vmatprep.subr.mxu0 0.0
    %44 = vmatpush1.msra.mxu0 0.0
    %45 = vmatprep.subr.mxu0 0.0
    %46 = vmatpush1.msra.mxu0 0.0
    %47 = vmatprep.subr.mxu0 0.0
    %48 = vmatpush1.msra.mxu0 0.0
    %49 = vmatprep.subr.mxu0 0.0
    %50 = vmatpush1.msra.mxu0 0.0
    %51 = vmatprep.subr.mxu0 0.0
    %52 = vmatpush1.msra.mxu0 0.0
    %53 = vmatprep.subr.mxu0 0.0
    %54 = vmatpush1.msra.mxu0 0.0
    %55 = vmatprep.subr.mxu0 0.0
    %56 = vmatpush1.msra.mxu0 0.0
    %57 = vmatprep.subr.mxu0 0.0
    %58 = vmatpush1.msra.mxu0 0.0
    %59 = vmatprep.subr.mxu0 0.0
    %60 = vmatpush1.msra.mxu0 0.0
    %61 = vmatprep.subr.mxu0 0.0
    %62 = vmatpush1.msra.mxu0 %v25
    %63 = vmatprep.subr.mxu0 0.0
    %64 = vmatpush1.msra.mxu0 %v24
    %65 = vmatprep.subr.mxu0 0.0
    %66 = vmatpush1.msra.mxu0 %v23
    %67 = vmatprep.subr.mxu0 0.0
    %68 = vmatpush1.msra.mxu0 %v22
    %69 = vmatprep.subr.mxu0 0.0
    %70 = vmatpush2.msra.mxu0 0.0
    %71 = vmatprep.subr.mxu0 0.0
    %72 = vmatpush2.msra.mxu0 0.0
    %73 = vmatprep.subr.mxu0 0.0
    %74 = vmatpush2.msra.mxu0 0.0
    %75 = vmatprep.subr.mxu0 0.0
    %76 = vmatpush2.msra.mxu0 0.0
    %77 = vmatprep.subr.mxu0 0.0
    %78 = vmatpush2.msra.mxu0 0.0
    %79 = vmatprep.subr.mxu0 0.0
    %80 = vmatpush2.msra.mxu0 0.0
    %81 = vmatprep.subr.mxu0 0.0
    %82 = vmatpush2.msra.mxu0 0.0
    %83 = vmatprep.subr.mxu0 0.0
    %84 = vmatpush2.msra.mxu0 0.0
    %85 = vmatprep.subr.mxu0 0.0
    %86 = vmatpush2.msra.mxu0 0.0
    %87 = vmatprep.subr.mxu0 0.0
    %88 = vmatpush2.msra.mxu0 0.0
    %89 = vmatprep.subr.mxu0 0.0
    %90 = vmatpush2.msra.mxu0 0.0
    %91 = vmatprep.subr.mxu0 0.0
    %92 = vmatpush2.msra.mxu0 0.0
    %93 = vmatprep.subr.mxu0 0.0
    %94 = vmatpush2.msra.mxu0 0.0
    %95 = vmatprep.subr.mxu0 0.0
    %96 = vmatpush2.msra.mxu0 0.0
    %97 = vmatprep.subr.mxu0 0.0
    %98 = vmatpush2.msra.mxu0 0.0
    %99 = vmatprep.subr.mxu0 0.0
    %100 = vmatpush2.msra.mxu0 0.0
    %101 = vmatprep.mubr.f32.mxu0 0.0
    %102 = vmatmul.mubr.f32.gmra.mxu0 %v35
    %v103 = vpop.f32.mrf.mxu0
    %v104 = vadd.f32 %v31, %v103
    %v105 = vpop.f32.mrf.mxu0
    %106 = vdwg.mxu0
    %vm107 = vcmask 1024
    %108 = vst.msk [vmem:[%s4] sm:$0x3] %vm107, %v104
    // Predicated region
    $region14: #{tpu_custom_call.1} parent=1 // pred_check
      _
    $region15: #{tpu_custom_call.1} parent=1 // pred_check_branch
      %110 = sbr.rel (0) target = $region17
    $region16: #{tpu_custom_call.1} parent=1 // pred_region
      %s112 = ssub.s32 32, 32
      %113 = vsyncadd [#allocation4], %s112
      %s115 = sshll.u32 [#allocation3], 4
      %s116 = int_to_ptr.vmem [resolvable:$true] %s115
      %118 = dma.vmem_to_hbm [thread:$0]  %s116, 32, %s3, [#allocation4]
    $region17: #{tpu_custom_call.1} parent=1 // pred_fallthru
      _
    // Predicated region
    $region18: #{tpu_custom_call.1} parent=1 // pred_check
      _
    $region19: #{tpu_custom_call.1} parent=1 // pred_check_branch
      %120 = sbr.rel (0) target = $region21
    $region20: #{tpu_custom_call.1} parent=1 // pred_region
      _
    $region21: #{tpu_custom_call.1} parent=1 // pred_fallthru
      _
    // Predicated region
    $region22: #{tpu_custom_call.1} parent=1 // pred_check
      _
    $region23: #{tpu_custom_call.1} parent=1 // pred_check_branch
      %122 = sbr.rel (0) target = $region25
    $region24: #{tpu_custom_call.1} parent=1 // pred_region
      %123 = dma.done [#allocation4], 32
    $region25: #{tpu_custom_call.1} parent=1 // pred_fallthru
      _
    // Predicated region
    $region26: #{tpu_custom_call.1} parent=1 // pred_check
      _
    $region27: #{tpu_custom_call.1} parent=1 // pred_check_branch
      %125 = sbr.rel (0) target = $region29
    $region28: #{tpu_custom_call.1} parent=1 // pred_region
      _
    $region29: #{tpu_custom_call.1} parent=1 // pred_fallthru
      _
    %126 = vsyncpa [#allocation4], 1

</llo_original>
